<compile_context>
chip_gen: v6e
topology: v6e:2x2x1
jax: 0.10.0
libtpu: 0.0.40
codegen_flags: <defaults>
</compile_context>

<pallas_src>
import functools

import jax
import jax.numpy as jnp
from jax import lax
from jax.experimental import pallas as pl
from jax.experimental.pallas import tpu as pltpu

LANES = 128
SUBLANES = 8
N_HIDDEN = 3          # linear1 output features (fixed by the module)


def _round_up(v, m):
    return (v + m - 1) // m * m


def _layout(batch, n):
    """Row offsets inside the packed (rows, 128) f32 input slab."""
    bn = batch * n
    b1_off = 3 * bn                    # rows [0, 3*bn): block-diag W1, lanes 0:bn
    w2_off = b1_off + N_HIDDEN         # 3 rows: b1 in lane 0
    b2_off = w2_off + N_HIDDEN         # 3 rows: W2^T zero-padded to 128 lanes
    param_rows = _round_up(b2_off + 1, SUBLANES)   # 1 row: b2 zero-padded
    x_off = param_rows                 # bn rows: x, lanes 0:K
    total_rows = _round_up(x_off + bn, SUBLANES)
    return bn, b1_off, w2_off, b2_off, x_off, param_rows, total_rows


def _trunk_kernel(buf_ref, o_ref, *, batch, n, k, bn,
                  b1_off, w2_off, b2_off, x_off):
    f32 = jnp.float32

    # Gram matrix of the flattened batch in ONE MXU push:
    #   s_full[(b,i), (b',j)] = <x[b,i,:], x[b',j,:]>
    xf = buf_ref[x_off:x_off + bn, 0:k]                            # (bn, k)
    s_full = lax.dot_general(xf, xf, (((1,), (1,)), ((), ())),
                             preferred_element_type=f32)           # (bn, bn)

    row_idx = lax.broadcasted_iota(jnp.int32, (SUBLANES, 1), 0)    # (8, 1)

    # linear2 accumulator, lane-padded: starts at b2 (zero in lanes >= p).
    acc = buf_ref[b2_off:b2_off + 1, :]                            # (1, 128)

    for o in range(N_HIDDEN):
        # Block-diagonal W1 plane: zero off the per-batch diagonal blocks, so
        # cross-batch entries of s_full never contribute to linear1.
        w1o = buf_ref[o * bn:(o + 1) * bn, 0:bn]                   # (bn, bn)
        ls = jnp.sum(s_full * w1o, axis=-1, keepdims=True)         # (bn, 1)

        # Per-batch sums over the n rows of each diagonal block, scattered
        # into an 8-sublane column (rows >= batch stay 0 -> don't-care).
        h1_pre = jnp.zeros((SUBLANES, 1), f32)
        for b in range(batch):
            blk = jnp.sum(ls[b * n:(b + 1) * n, :],
                          axis=0, keepdims=True)                   # (1, 1)
            h1_pre = jnp.where(row_idx == b, blk, h1_pre)

        b1_o = buf_ref[b1_off + o:b1_off + o + 1, 0:1]             # (1, 1)
        h1_o = jnp.tanh(h1_pre + b1_o)                             # (8, 1)

        # linear2 on the VPU: broadcast FMA against the lane-padded W2^T row.
        w2_row = buf_ref[w2_off + o:w2_off + o + 1, :]             # (1, 128)
        acc = acc + h1_o * w2_row                                  # (8, 128)

    # Lane- and sublane-dense store; padding lanes (>= p) are exactly 0
    # (zero-padded W2^T/b2, tanh(0)=0); padding rows (>= batch) are sliced
    # off by the wrapper.
    o_ref[...] = jnp.tanh(acc)                                     # (8, 128)


def pack_trunk_params(w1, b1, w2, b2, *, batch, n):
    """Pack all weights into the parameter rows of the kernel's input slab.

    Call ONCE per (weight set, batch size); reuse the result across calls.
    """
    p_out = w2.shape[0]
    bn, b1_off, w2_off, b2_off, _x_off, param_rows, _tot = _layout(batch, n)
    assert w1.shape == (N_HIDDEN, n * n)
    assert bn <= LANES and p_out <= LANES, "toy-size kernel: B*n, p must fit lanes"

    w1r = w1.reshape(N_HIDDEN, n, n).astype(jnp.float32)
    # Block-diagonal expansion over the batch (kills cross-batch gram terms).
    w1bd = jnp.zeros((N_HIDDEN, bn, bn), jnp.float32)
    for b in range(batch):
        w1bd = w1bd.at[:, b * n:(b + 1) * n, b * n:(b + 1) * n].set(w1r)

    slab = jnp.zeros((param_rows, LANES), jnp.float32)
    slab = slab.at[0:N_HIDDEN * bn, 0:bn].set(w1bd.reshape(N_HIDDEN * bn, bn))
    slab = slab.at[b1_off:b1_off + N_HIDDEN, 0].set(b1.astype(jnp.float32))
    slab = slab.at[w2_off:w2_off + N_HIDDEN, 0:p_out].set(w2.T.astype(jnp.float32))
    slab = slab.at[b2_off, 0:p_out].set(b2.astype(jnp.float32))
    return slab


@functools.partial(jax.jit, static_argnames=("n", "p_out"))
def trunk_forward(x, params_slab, *, n, p_out):
    """x: (B, n, K) with precomputed params_slab from pack_trunk_params."""
    batch, n_in, k = x.shape
    assert n_in == n and k <= LANES
    assert batch <= SUBLANES, "toy-size kernel: grid over batch to scale"
    bn, b1_off, w2_off, b2_off, x_off, param_rows, total_rows = _layout(batch, n)
    assert params_slab.shape == (param_rows, LANES)

    # Per-call slab: precomputed param rows + lane-padded x rows -> ONE DMA.
    # (If x arrives as bf16 a bf16 x-region would halve its bytes; kept f32
    #  here since inputs are f32 and v5e has no bf16 VPU/EUP.)
    xr = x.reshape(bn, k).astype(jnp.float32)
    x_rows = jnp.pad(xr, ((0, total_rows - param_rows - bn), (0, LANES - k)))
    buf = jnp.concatenate([params_slab, x_rows], axis=0)        # (rows, 128)

    kernel = functools.partial(
        _trunk_kernel, batch=batch, n=n, k=k, bn=bn,
        b1_off=b1_off, w2_off=w2_off, b2_off=b2_off, x_off=x_off)

    out_padded = pl.pallas_call(
        kernel,
        out_shape=jax.ShapeDtypeStruct((SUBLANES, LANES), jnp.float32),
        in_specs=[pl.BlockSpec(memory_space=pltpu.MemorySpace.VMEM)],
        out_specs=pl.BlockSpec(memory_space=pltpu.MemorySpace.VMEM),
    )(buf)

    # Strip sublane/lane padding outside the kernel.
    return out_padded[:batch, :p_out].astype(x.dtype)


def trunk_reference(x, w1, b1, w2, b2):
    s = jnp.einsum("bik,bjk->bij", x, x)
    s = s.reshape(x.shape[0], -1)
    s = jnp.tanh(s @ w1.T + b1)
    s = jnp.tanh(s @ w2.T + b2)
    return s


if __name__ == "__main__":
    # Small shapes consistent with the module: n = 8 (in_size = 64), p = 2.
    B, n, K, P = 2, 8, 16, 2

    key = jax.random.PRNGKey(0)
    kx, k1w, k1b, k2w, k2b = jax.random.split(key, 5)

    x = jax.random.normal(kx, (B, n, K), dtype=jnp.float32)

    # Deterministic nn.Linear-style init: U(-1/sqrt(fan_in), 1/sqrt(fan_in)).
    bound1 = 1.0 / jnp.sqrt(float(n * n))
    w1 = jax.random.uniform(k1w, (3, n * n), jnp.float32, -bound1, bound1)
    b1 = jax.random.uniform(k1b, (3,), jnp.float32, -bound1, bound1)
    bound2 = 1.0 / jnp.sqrt(3.0)
    w2 = jax.random.uniform(k2w, (P, 3), jnp.float32, -bound2, bound2)
    b2 = jax.random.uniform(k2b, (P,), jnp.float32, -bound2, bound2)

    # Parameter packing hoisted out of the per-call path: pack ONCE, reuse.
    params_slab = pack_trunk_params(w1, b1, w2, b2, batch=B, n=n)

    out = trunk_forward(x, params_slab, n=n, p_out=P)
    out = jax.block_until_ready(out)

    ref = trunk_reference(x, w1, b1, w2, b2)
    assert out.shape == (B, P), out.shape
    assert jnp.allclose(out, ref, atol=1e-5, rtol=1e-5), (out, ref)

    print("KERNEL_OK")
</pallas_src>

<mosaic_0001>
module attributes {stable_mosaic.version = 11 : i64} {
  func.func @_trunk_kernel(%arg0: memref<72x128xf32, #tpu.memory_space<vmem>>, %arg1: memref<8x128xf32, #tpu.memory_space<vmem>>) attributes {dimension_semantics = [], scalar_prefetch = 0 : i64, scratch_operands = 0 : i64, tpu.core_type = #tpu.core_type<tc>} {
    %c56 = arith.constant 56 : index
    %c0 = arith.constant 0 : index
    %0 = vector.load %arg0[%c56, %c0] : memref<72x128xf32, #tpu.memory_space<vmem>>, vector<16x16xf32>
    %cst = arith.constant dense<0.000000e+00> : vector<16x16xf32>
    %1 = tpu.matmul %0, %0, %cst {dimension_numbers = #tpu.dot_dimension_numbers<[1], [1], [0], [0], [0, 0, 1, 0], [], []>} : vector<16x16xf32>, vector<16x16xf32>, vector<16x16xf32> -> vector<16x16xf32>
    %2 = tpu.iota {dimensions = array<i32: 0>} : vector<8x1xi32>
    %c54 = arith.constant 54 : index
    %c0_0 = arith.constant 0 : index
    %3 = vector.load %arg0[%c54, %c0_0] : memref<72x128xf32, #tpu.memory_space<vmem>>, vector<1x128xf32>
    %c0_1 = arith.constant 0 : index
    %c0_2 = arith.constant 0 : index
    %4 = vector.load %arg0[%c0_1, %c0_2] : memref<72x128xf32, #tpu.memory_space<vmem>>, vector<16x16xf32>
    %5 = arith.mulf %1, %4 : vector<16x16xf32>
    %cst_3 = arith.constant dense<0.000000e+00> : vector<16xf32>
    %6 = vector.multi_reduction <add>, %5, %cst_3 [1] : vector<16x16xf32> to vector<16xf32>
    %7 = vector.shape_cast %6 : vector<16xf32> to vector<16x1xf32>
    %cst_4 = arith.constant 0.000000e+00 : f32
    %8 = vector.broadcast %cst_4 : f32 to vector<8x1xf32>
    %9 = vector.extract_strided_slice %7 {offsets = [0, 0], sizes = [8, 1], strides = [1, 1]} : vector<16x1xf32> to vector<8x1xf32>
    %cst_5 = arith.constant dense<0.000000e+00> : vector<1xf32>
    %10 = vector.multi_reduction <add>, %9, %cst_5 [0] : vector<8x1xf32> to vector<1xf32>
    %11 = vector.shape_cast %10 : vector<1xf32> to vector<1x1xf32>
    %c0_i32 = arith.constant 0 : i32
    %12 = vector.broadcast %c0_i32 : i32 to vector<8x1xi32>
    %13 = arith.cmpi eq, %2, %12 : vector<8x1xi32>
    %14 = vector.shape_cast %11 : vector<1x1xf32> to vector<1x1xf32>
    %15 = vector.broadcast %14 : vector<1x1xf32> to vector<8x1xf32>
    %16 = arith.select %13, %15, %8 : vector<8x1xi1>, vector<8x1xf32>
    %17 = vector.extract_strided_slice %7 {offsets = [8, 0], sizes = [8, 1], strides = [1, 1]} : vector<16x1xf32> to vector<8x1xf32>
    %cst_6 = arith.constant dense<0.000000e+00> : vector<1xf32>
    %18 = vector.multi_reduction <add>, %17, %cst_6 [0] : vector<8x1xf32> to vector<1xf32>
    %19 = vector.shape_cast %18 : vector<1xf32> to vector<1x1xf32>
    %c1_i32 = arith.constant 1 : i32
    %20 = vector.broadcast %c1_i32 : i32 to vector<8x1xi32>
    %21 = arith.cmpi eq, %2, %20 : vector<8x1xi32>
    %22 = vector.shape_cast %19 : vector<1x1xf32> to vector<1x1xf32>
    %23 = vector.broadcast %22 : vector<1x1xf32> to vector<8x1xf32>
    %24 = arith.select %21, %23, %16 : vector<8x1xi1>, vector<8x1xf32>
    %c48 = arith.constant 48 : index
    %c0_7 = arith.constant 0 : index
    %25 = vector.load %arg0[%c48, %c0_7] : memref<72x128xf32, #tpu.memory_space<vmem>>, vector<1x1xf32>
    %26 = vector.broadcast %25 : vector<1x1xf32> to vector<8x1xf32>
    %27 = arith.addf %24, %26 : vector<8x1xf32>
    %28 = math.tanh %27 : vector<8x1xf32>
    %c51 = arith.constant 51 : index
    %c0_8 = arith.constant 0 : index
    %29 = vector.load %arg0[%c51, %c0_8] : memref<72x128xf32, #tpu.memory_space<vmem>>, vector<1x128xf32>
    %30 = vector.broadcast %28 : vector<8x1xf32> to vector<8x128xf32>
    %31 = vector.broadcast %29 : vector<1x128xf32> to vector<8x128xf32>
    %32 = arith.mulf %30, %31 : vector<8x128xf32>
    %33 = vector.broadcast %3 : vector<1x128xf32> to vector<8x128xf32>
    %34 = arith.addf %33, %32 : vector<8x128xf32>
    %c16 = arith.constant 16 : index
    %c0_9 = arith.constant 0 : index
    %35 = vector.load %arg0[%c16, %c0_9] : memref<72x128xf32, #tpu.memory_space<vmem>>, vector<16x16xf32>
    %36 = arith.mulf %1, %35 : vector<16x16xf32>
    %cst_10 = arith.constant dense<0.000000e+00> : vector<16xf32>
    %37 = vector.multi_reduction <add>, %36, %cst_10 [1] : vector<16x16xf32> to vector<16xf32>
    %38 = vector.shape_cast %37 : vector<16xf32> to vector<16x1xf32>
    %cst_11 = arith.constant 0.000000e+00 : f32
    %39 = vector.broadcast %cst_11 : f32 to vector<8x1xf32>
    %40 = vector.extract_strided_slice %38 {offsets = [0, 0], sizes = [8, 1], strides = [1, 1]} : vector<16x1xf32> to vector<8x1xf32>
    %cst_12 = arith.constant dense<0.000000e+00> : vector<1xf32>
    %41 = vector.multi_reduction <add>, %40, %cst_12 [0] : vector<8x1xf32> to vector<1xf32>
    %42 = vector.shape_cast %41 : vector<1xf32> to vector<1x1xf32>
    %c0_i32_13 = arith.constant 0 : i32
    %43 = vector.broadcast %c0_i32_13 : i32 to vector<8x1xi32>
    %44 = arith.cmpi eq, %2, %43 : vector<8x1xi32>
    %45 = vector.shape_cast %42 : vector<1x1xf32> to vector<1x1xf32>
    %46 = vector.broadcast %45 : vector<1x1xf32> to vector<8x1xf32>
    %47 = arith.select %44, %46, %39 : vector<8x1xi1>, vector<8x1xf32>
    %48 = vector.extract_strided_slice %38 {offsets = [8, 0], sizes = [8, 1], strides = [1, 1]} : vector<16x1xf32> to vector<8x1xf32>
    %cst_14 = arith.constant dense<0.000000e+00> : vector<1xf32>
    %49 = vector.multi_reduction <add>, %48, %cst_14 [0] : vector<8x1xf32> to vector<1xf32>
    %50 = vector.shape_cast %49 : vector<1xf32> to vector<1x1xf32>
    %c1_i32_15 = arith.constant 1 : i32
    %51 = vector.broadcast %c1_i32_15 : i32 to vector<8x1xi32>
    %52 = arith.cmpi eq, %2, %51 : vector<8x1xi32>
    %53 = vector.shape_cast %50 : vector<1x1xf32> to vector<1x1xf32>
    %54 = vector.broadcast %53 : vector<1x1xf32> to vector<8x1xf32>
    %55 = arith.select %52, %54, %47 : vector<8x1xi1>, vector<8x1xf32>
    %c49 = arith.constant 49 : index
    %c0_16 = arith.constant 0 : index
    %56 = vector.load %arg0[%c49, %c0_16] : memref<72x128xf32, #tpu.memory_space<vmem>>, vector<1x1xf32>
    %57 = vector.broadcast %56 : vector<1x1xf32> to vector<8x1xf32>
    %58 = arith.addf %55, %57 : vector<8x1xf32>
    %59 = math.tanh %58 : vector<8x1xf32>
    %c52 = arith.constant 52 : index
    %c0_17 = arith.constant 0 : index
    %60 = vector.load %arg0[%c52, %c0_17] : memref<72x128xf32, #tpu.memory_space<vmem>>, vector<1x128xf32>
    %61 = vector.broadcast %59 : vector<8x1xf32> to vector<8x128xf32>
    %62 = vector.broadcast %60 : vector<1x128xf32> to vector<8x128xf32>
    %63 = arith.mulf %61, %62 : vector<8x128xf32>
    %64 = arith.addf %34, %63 : vector<8x128xf32>
    %c32 = arith.constant 32 : index
    %c0_18 = arith.constant 0 : index
    %65 = vector.load %arg0[%c32, %c0_18] : memref<72x128xf32, #tpu.memory_space<vmem>>, vector<16x16xf32>
    %66 = arith.mulf %1, %65 : vector<16x16xf32>
    %cst_19 = arith.constant dense<0.000000e+00> : vector<16xf32>
    %67 = vector.multi_reduction <add>, %66, %cst_19 [1] : vector<16x16xf32> to vector<16xf32>
    %68 = vector.shape_cast %67 : vector<16xf32> to vector<16x1xf32>
    %cst_20 = arith.constant 0.000000e+00 : f32
    %69 = vector.broadcast %cst_20 : f32 to vector<8x1xf32>
    %70 = vector.extract_strided_slice %68 {offsets = [0, 0], sizes = [8, 1], strides = [1, 1]} : vector<16x1xf32> to vector<8x1xf32>
    %cst_21 = arith.constant dense<0.000000e+00> : vector<1xf32>
    %71 = vector.multi_reduction <add>, %70, %cst_21 [0] : vector<8x1xf32> to vector<1xf32>
    %72 = vector.shape_cast %71 : vector<1xf32> to vector<1x1xf32>
    %c0_i32_22 = arith.constant 0 : i32
    %73 = vector.broadcast %c0_i32_22 : i32 to vector<8x1xi32>
    %74 = arith.cmpi eq, %2, %73 : vector<8x1xi32>
    %75 = vector.shape_cast %72 : vector<1x1xf32> to vector<1x1xf32>
    %76 = vector.broadcast %75 : vector<1x1xf32> to vector<8x1xf32>
    %77 = arith.select %74, %76, %69 : vector<8x1xi1>, vector<8x1xf32>
    %78 = vector.extract_strided_slice %68 {offsets = [8, 0], sizes = [8, 1], strides = [1, 1]} : vector<16x1xf32> to vector<8x1xf32>
    %cst_23 = arith.constant dense<0.000000e+00> : vector<1xf32>
    %79 = vector.multi_reduction <add>, %78, %cst_23 [0] : vector<8x1xf32> to vector<1xf32>
    %80 = vector.shape_cast %79 : vector<1xf32> to vector<1x1xf32>
    %c1_i32_24 = arith.constant 1 : i32
    %81 = vector.broadcast %c1_i32_24 : i32 to vector<8x1xi32>
    %82 = arith.cmpi eq, %2, %81 : vector<8x1xi32>
    %83 = vector.shape_cast %80 : vector<1x1xf32> to vector<1x1xf32>
    %84 = vector.broadcast %83 : vector<1x1xf32> to vector<8x1xf32>
    %85 = arith.select %82, %84, %77 : vector<8x1xi1>, vector<8x1xf32>
    %c50 = arith.constant 50 : index
    %c0_25 = arith.constant 0 : index
    %86 = vector.load %arg0[%c50, %c0_25] : memref<72x128xf32, #tpu.memory_space<vmem>>, vector<1x1xf32>
    %87 = vector.broadcast %86 : vector<1x1xf32> to vector<8x1xf32>
    %88 = arith.addf %85, %87 : vector<8x1xf32>
    %89 = math.tanh %88 : vector<8x1xf32>
    %c53 = arith.constant 53 : index
    %c0_26 = arith.constant 0 : index
    %90 = vector.load %arg0[%c53, %c0_26] : memref<72x128xf32, #tpu.memory_space<vmem>>, vector<1x128xf32>
    %91 = vector.broadcast %89 : vector<8x1xf32> to vector<8x128xf32>
    %92 = vector.broadcast %90 : vector<1x128xf32> to vector<8x128xf32>
    %93 = arith.mulf %91, %92 : vector<8x128xf32>
    %94 = arith.addf %64, %93 : vector<8x128xf32>
    %95 = math.tanh %94 : vector<8x128xf32>
    %c0_27 = arith.constant 0 : index
    %c0_28 = arith.constant 0 : index
    %96 = vector.load %arg1[%c0_27, %c0_28] : memref<8x128xf32, #tpu.memory_space<vmem>>, vector<8x128xf32>
    tpu.vector_store %arg1[%c0_27, %c0_28], %95 {strides = array<i32>} : memref<8x128xf32, #tpu.memory_space<vmem>>, vector<8x128xf32>,
    return
  }
}

</mosaic_0001>

<llo_original>
// kernel: trunk_forward.1
$region0: #{trunk_forward.1}
  #allocation0 [shape = 'u32[]', space=smem, size = 0x4, offset = 0x4, fixed_abs, tag = 'smem constant byte address 0x4 - core index']
  #allocation1 [shape = 'u32[144,128]{1,0:T(1,128)}', space=vmem, size = 0x12000, scoped, tag = 'internal scratch']
  %s0 = inlined_call_operand.vmem [shape: f32[72,128], index: 0, kind: input, shape index: {}]
  %s1 = inlined_call_operand.vmem [shape: f32[8,128], index: 1, kind: output, shape index: {}]
  %s2 = sld [smem:[#allocation0]]
  $region14: #{trunk_forward.1} parent=0
    _
  %s4 = ssub.s32 1, %s2
  %s5 = scalar_select 0, %s4, %s2
  // Predicated region
  $region2: #{trunk_forward.1} parent=0 // pred_check
    _
  $region3: #{trunk_forward.1} parent=0 // pred_check_branch
    %7 = sbr.rel (0) target = $region5
  $region4: #{trunk_forward.1} parent=0 // pred_region
    _
  $region5: #{trunk_forward.1} parent=0 // pred_fallthru
    _
  %v8 = vld [vmem:[%s0 + $0x38] sm:$0xff]
  %v9 = vld [vmem:[%s0 + $0x40] sm:$0xff]
  %vm10 = vcmask 130048
  %v12 = vsel %vm10, %v8, 0
  %v15 = vsel %vm10, %v9, 0
  %17 = vmatprep.subr.mxu0 0.0
  %18 = vmatpush1.xpose.msra.mxu0 0.0
  %19 = vmatprep.subr.mxu0 0.0
  %20 = vmatpush1.xpose.msra.mxu0 0.0
  %21 = vmatprep.subr.mxu0 0.0
  %22 = vmatpush1.xpose.msra.mxu0 0.0
  %23 = vmatprep.subr.mxu0 0.0
  %24 = vmatpush1.xpose.msra.mxu0 0.0
  %25 = vmatprep.subr.mxu0 0.0
  %26 = vmatpush1.xpose.msra.mxu0 0.0
  %27 = vmatprep.subr.mxu0 0.0
  %28 = vmatpush1.xpose.msra.mxu0 0.0
  %29 = vmatprep.subr.mxu0 0.0
  %30 = vmatpush1.xpose.msra.mxu0 0.0
  %31 = vmatprep.subr.mxu0 0.0
  %32 = vmatpush1.xpose.msra.mxu0 0.0
  %33 = vmatprep.subr.mxu0 0.0
  %34 = vmatpush1.xpose.msra.mxu0 0.0
  %35 = vmatprep.subr.mxu0 0.0
  %36 = vmatpush1.xpose.msra.mxu0 0.0
  %37 = vmatprep.subr.mxu0 0.0
  %38 = vmatpush1.xpose.msra.mxu0 0.0
  %39 = vmatprep.subr.mxu0 0.0
  %40 = vmatpush1.xpose.msra.mxu0 0.0
  %41 = vmatprep.subr.mxu0 0.0
  %42 = vmatpush1.xpose.msra.mxu0 0.0
  %43 = vmatprep.subr.mxu0 0.0
  %44 = vmatpush1.xpose.msra.mxu0 0.0
  %45 = vmatprep.subr.mxu0 0.0
  %46 = vmatpush1.xpose.msra.mxu0 %v15
  %47 = vmatprep.subr.mxu0 0.0
  %48 = vmatpush1.xpose.msra.mxu0 %v12
  %49 = vmatprep.subr.mxu0 0.0
  %50 = vmatpush2.xpose.msra.mxu0 0.0
  %51 = vmatprep.subr.mxu0 0.0
  %52 = vmatpush2.xpose.msra.mxu0 0.0
  %53 = vmatprep.subr.mxu0 0.0
  %54 = vmatpush2.xpose.msra.mxu0 0.0
  %55 = vmatprep.subr.mxu0 0.0
  %56 = vmatpush2.xpose.msra.mxu0 0.0
  %57 = vmatprep.subr.mxu0 0.0
  %58 = vmatpush2.xpose.msra.mxu0 0.0
  %59 = vmatprep.subr.mxu0 0.0
  %60 = vmatpush2.xpose.msra.mxu0 0.0
  %61 = vmatprep.subr.mxu0 0.0
  %62 = vmatpush2.xpose.msra.mxu0 0.0
  %63 = vmatprep.subr.mxu0 0.0
  %64 = vmatpush2.xpose.msra.mxu0 0.0
  %65 = vmatprep.subr.mxu0 0.0
  %66 = vmatpush2.xpose.msra.mxu0 0.0
  %67 = vmatprep.subr.mxu0 0.0
  %68 = vmatpush2.xpose.msra.mxu0 0.0
  %69 = vmatprep.subr.mxu0 0.0
  %70 = vmatpush2.xpose.msra.mxu0 0.0
  %71 = vmatprep.subr.mxu0 0.0
  %72 = vmatpush2.xpose.msra.mxu0 0.0
  %73 = vmatprep.subr.mxu0 0.0
  %74 = vmatpush2.xpose.msra.mxu0 0.0
  %75 = vmatprep.subr.mxu0 0.0
  %76 = vmatpush2.xpose.msra.mxu0 0.0
  %77 = vmatprep.subr.mxu0 0.0
  %78 = vmatpush2.xpose.msra.mxu0 0.0
  %79 = vmatprep.subr.mxu0 0.0
  %80 = vmatpush2.xpose.msra.mxu0 0.0
  %81 = vmatprep.mubr.f32.mxu0 0.0
  %82 = vmatmul.mubr.f32.gmra.mxu0 %v12
  %v83 = vpop.f32.mrf.mxu0
  %v84 = vadd.f32 0.0, %v83
  %v85 = vpop.f32.mrf.mxu0
  %86 = vmatprep.mubr.f32.mxu0 0.0
  %87 = vmatmul.mubr.f32.gmra.mxu0 %v15
  %v88 = vpop.f32.mrf.mxu0
  %v89 = vadd.f32 0.0, %v88
  %v90 = vpop.f32.mrf.mxu0
  %91 = vdwg.mxu0
  %v92 = vlaneseq
  %v93 = vshrl.u32 %v92, 7
  %v94 = vld [vmem:[%s0 + $0x36] sm:$0x1]
  %v95 = vld [vmem:[%s0] sm:$0xff]
  %v96 = vld [vmem:[%s0 + $0x8] sm:$0xff]
  %v97 = vmul.f32 %v84, %v95
  %v98 = vmul.f32 %v89, %v96
  %v99 = vsel %vm10, %v97, 0.0
  %100 = vadd.xlane.f32.xlu0 %v99
  %v101 = vpop.xlane.xlu0 %100
  %v102 = vsel %vm10, %v98, 0.0
  %103 = vadd.xlane.f32.xlu0 %v102
  %v104 = vpop.xlane.xlu0 %103
  %v105 = vrot.slane %v101, 4
  %v106 = vadd.f32 %v101, %v105
  %v107 = vrot.slane %v106, 2
  %v108 = vadd.f32 %v106, %v107
  %v109 = vrot.slane %v108, 1
  %v110 = vadd.f32 %v108, %v109
  %vm111 = vcmp.eq.s32.totalorder %v93, 0
  %v112 = vsel %vm111, %v110, 0.0
  %v113 = vrot.slane %v104, 4
  %v114 = vadd.f32 %v104, %v113
  %v115 = vrot.slane %v114, 2
  %v116 = vadd.f32 %v114, %v115
  %v117 = vrot.slane %v116, 1
  %v118 = vadd.f32 %v116, %v117
  %vm119 = vcmp.eq.s32.totalorder %v93, 1
  %v120 = vsel %vm119, %v118, %v112
  %v121 = vld [vmem:[%s0 + $0x30] sm:$0x1]
  %v122 = vlaneseq
  %v123 = vshrl.u32 %v122, 7
  %v124 = vsub.s32 0, %v123
  %v125 = vrot.slane %v121, %v124
  %v126 = vadd.f32 %v120, %v125
  %v127 = vtanh.pop %v126
  %v128 = vld [vmem:[%s0 + $0x33] sm:$0x1]
  %130 = vset.pattern.permute.xlu0 0
  %131 = vperm.xlu0 %130, %v127
  %v132 = vpop.permute.xlu0 %131
  %v134 = vlaneseq
  %v135 = vshrl.u32 %v134, 7
  %v136 = vsub.s32 0, %v135
  %v137 = vrot.slane %v128, %v136
  %v138 = vmul.f32 %v132, %v137
  %v139 = vlaneseq
  %v140 = vshrl.u32 %v139, 7
  %v141 = vsub.s32 0, %v140
  %v142 = vrot.slane %v94, %v141
  %v143 = vadd.f32 %v142, %v138
  %v144 = vld [vmem:[%s0 + $0x10] sm:$0xff]
  %v145 = vld [vmem:[%s0 + $0x18] sm:$0xff]
  %v146 = vmul.f32 %v84, %v144
  %v147 = vmul.f32 %v89, %v145
  %v148 = vsel %vm10, %v146, 0.0
  %149 = vadd.xlane.f32.xlu0 %v148
  %v150 = vpop.xlane.xlu0 %149
  %v151 = vsel %vm10, %v147, 0.0
  %152 = vadd.xlane.f32.xlu0 %v151
  %v153 = vpop.xlane.xlu0 %152
  %v154 = vrot.slane %v150, 4
  %v155 = vadd.f32 %v150, %v154
  %v156 = vrot.slane %v155, 2
  %v157 = vadd.f32 %v155, %v156
  %v158 = vrot.slane %v157, 1
  %v159 = vadd.f32 %v157, %v158
  %v160 = vsel %vm111, %v159, 0.0
  %v161 = vrot.slane %v153, 4
  %v162 = vadd.f32 %v153, %v161
  %v163 = vrot.slane %v162, 2
  %v164 = vadd.f32 %v162, %v163
  %v165 = vrot.slane %v164, 1
  %v166 = vadd.f32 %v164, %v165
  %v167 = vsel %vm119, %v166, %v160
  %v168 = vld [vmem:[%s0 + $0x31] sm:$0x1]
  %v169 = vlaneseq
  %v170 = vshrl.u32 %v169, 7
  %v171 = vsub.s32 0, %v170
  %v172 = vrot.slane %v168, %v171
  %v173 = vadd.f32 %v167, %v172
  %v174 = vtanh.pop %v173
  %v175 = vld [vmem:[%s0 + $0x34] sm:$0x1]
  %177 = vset.pattern.permute.xlu0 0
  %178 = vperm.xlu0 %177, %v174
  %v179 = vpop.permute.xlu0 %178
  %v181 = vlaneseq
  %v182 = vshrl.u32 %v181, 7
  %v183 = vsub.s32 0, %v182
  %v184 = vrot.slane %v175, %v183
  %v185 = vmul.f32 %v179, %v184
  %v186 = vadd.f32 %v143, %v185
  %v187 = vld [vmem:[%s0 + $0x20] sm:$0xff]
  %v188 = vld [vmem:[%s0 + $0x28] sm:$0xff]
  %v189 = vmul.f32 %v84, %v187
  %v190 = vmul.f32 %v89, %v188
  %v191 = vsel %vm10, %v189, 0.0
  %192 = vadd.xlane.f32.xlu0 %v191
  %v193 = vpop.xlane.xlu0 %192
  %v194 = vsel %vm10, %v190, 0.0
  %195 = vadd.xlane.f32.xlu0 %v194
  %v196 = vpop.xlane.xlu0 %195
  %v197 = vrot.slane %v193, 4
  %v198 = vadd.f32 %v193, %v197
  %v199 = vrot.slane %v198, 2
  %v200 = vadd.f32 %v198, %v199
  %v201 = vrot.slane %v200, 1
  %v202 = vadd.f32 %v200, %v201
  %v203 = vsel %vm111, %v202, 0.0
  %v204 = vrot.slane %v196, 4
  %v205 = vadd.f32 %v196, %v204
  %v206 = vrot.slane %v205, 2
  %v207 = vadd.f32 %v205, %v206
  %v208 = vrot.slane %v207, 1
  %v209 = vadd.f32 %v207, %v208
  %v210 = vsel %vm119, %v209, %v203
  %v211 = vld [vmem:[%s0 + $0x32] sm:$0x1]
  %v212 = vlaneseq
  %v213 = vshrl.u32 %v212, 7
  %v214 = vsub.s32 0, %v213
  %v215 = vrot.slane %v211, %v214
  %v216 = vadd.f32 %v210, %v215
  %v217 = vtanh.pop %v216
  %v218 = vld [vmem:[%s0 + $0x35] sm:$0x1]
  %220 = vset.pattern.permute.xlu0 0
  %221 = vperm.xlu0 %220, %v217
  %v222 = vpop.permute.xlu0 %221
  %v224 = vlaneseq
  %v225 = vshrl.u32 %v224, 7
  %v226 = vsub.s32 0, %v225
  %v227 = vrot.slane %v218, %v226
  %v228 = vmul.f32 %v222, %v227
  %v229 = vadd.f32 %v186, %v228
  %v230 = vtanh.pop %v229
  %231 = vst [vmem:[%s1] sm:$0xff] %v230
  // Predicated region
  $region6: #{trunk_forward.1} parent=0 // pred_check
    _
  $region7: #{trunk_forward.1} parent=0 // pred_check_branch
    %233 = sbr.rel (0) target = $region9
  $region8: #{trunk_forward.1} parent=0 // pred_region
    _
  $region9: #{trunk_forward.1} parent=0 // pred_fallthru
    _
  // Predicated region
  $region10: #{trunk_forward.1} parent=0 // pred_check
    _
  $region11: #{trunk_forward.1} parent=0 // pred_check_branch
    %235 = sbr.rel (0) target = $region13
  $region12: #{trunk_forward.1} parent=0 // pred_region
    _
  $region13: #{trunk_forward.1} parent=0 // pred_fallthru
    _

</llo_original>
